<compile_context>
chip_gen: v5e
topology: v5e:2x2
jax: 0.10.0
libtpu: 0.0.40
codegen_flags: <defaults>
</compile_context>

<pallas_src>
import jax
import jax.numpy as jnp
from jax import lax
from jax.experimental import pallas as pl
from jax.experimental.pallas import tpu as pltpu


# ---------------------------------------------------------------------------
# Kernel 1: per-head QKV projection, scale folded into q.
# grid = (B, N/block_n, H); the x tile is reused across the inner head axis.
# ---------------------------------------------------------------------------
def qkv_proj_kernel(x_ref, wq_ref, wk_ref, wv_ref, scale_ref,
                    q_ref, k_ref, v_ref):
    h = pl.program_id(2)
    x = x_ref[0].astype(jnp.bfloat16)                       # (block_n, C)
    q = jnp.dot(x, wq_ref[0], preferred_element_type=jnp.float32)
    q = q * scale_ref[h]                                    # fold per-head scale into q
    k = jnp.dot(x, wk_ref[0], preferred_element_type=jnp.float32)
    v = jnp.dot(x, wv_ref[0], preferred_element_type=jnp.float32)
    q_ref[0, 0] = q.astype(q_ref.dtype)                     # bf16
    k_ref[0, 0] = k.astype(k_ref.dtype)                     # bf16
    v_ref[0, 0] = v.astype(v_ref.dtype)                     # f32 (also the H==1 residual)


# ---------------------------------------------------------------------------
# Kernel 2: flash-style LMSA attention + output projection + residual.
# grid = (B, Nq, H, Nk); m/l/acc carried in VMEM scratch across the kv axis,
# the projected output carried across the (head, kv) axes.
# ---------------------------------------------------------------------------
def flash_lmsa_kernel(q_ref, k_ref, v_ref, res_ref, wproj_ref, bproj_ref,
                      out_ref, m_sc, l_sc, acc_sc, proj_sc):
    qi = pl.program_id(1)
    h = pl.program_id(2)
    ki = pl.program_id(3)
    n_h = pl.num_programs(2)
    n_k = pl.num_programs(3)

    block_q = q_ref.shape[2]
    block_k = k_ref.shape[2]

    @pl.when(jnp.logical_and(h == 0, ki == 0))
    def _():
        proj_sc[...] = jnp.zeros(proj_sc.shape, proj_sc.dtype)

    @pl.when(ki == 0)
    def _():
        m_sc[...] = jnp.full(m_sc.shape, -jnp.inf, m_sc.dtype)
        l_sc[...] = jnp.zeros(l_sc.shape, l_sc.dtype)
        acc_sc[...] = jnp.zeros(acc_sc.shape, acc_sc.dtype)

    q = q_ref[0, 0]                                         # (block_q, d) bf16, pre-scaled
    k = k_ref[0, 0]                                         # (block_k, d) bf16
    # q @ k^T (contract on the last dims; no explicit transpose).
    s = lax.dot_general(q, k, (((1,), (1,)), ((), ())),
                        preferred_element_type=jnp.float32)  # (block_q, block_k) f32

    # Per-tile diagonal (self-token) mask: compare global row/col indices.
    row = qi * block_q + lax.broadcasted_iota(jnp.int32, (block_q, block_k), 0)
    col = ki * block_k + lax.broadcasted_iota(jnp.int32, (block_q, block_k), 1)
    s = jnp.where(row == col, -jnp.inf, s)

    # Online softmax update (statistics in f32).
    m_prev = m_sc[...]
    m_new = jnp.maximum(m_prev, s.max(axis=-1, keepdims=True))
    alpha = jnp.exp(m_prev - m_new)
    p = jnp.exp(s - m_new)
    l_sc[...] = alpha * l_sc[...] + p.sum(axis=-1, keepdims=True)
    v = v_ref[0, 0].astype(jnp.bfloat16)                    # (block_k, d)
    acc_sc[...] = alpha * acc_sc[...] + jnp.dot(
        p.astype(jnp.bfloat16), v, preferred_element_type=jnp.float32)
    m_sc[...] = m_new

    # End of kv loop for this head: normalize context and project with this
    # head's (d, in_dim) slice of Wproj, accumulating into proj_sc.
    @pl.when(ki == n_k - 1)
    def _():
        ctx = acc_sc[...] * pl.reciprocal(l_sc[...], approx=True)   # (block_q, d)
        wp = wproj_ref[h]                                           # (d, in_dim) bf16
        proj_sc[...] += jnp.dot(ctx.astype(jnp.bfloat16), wp,
                                preferred_element_type=jnp.float32)

    # Last head and last kv tile: add bias + residual and store the output tile.
    @pl.when(jnp.logical_and(h == n_h - 1, ki == n_k - 1))
    def _():
        out_ref[0] = (proj_sc[...] + bproj_ref[...] + res_ref[0]).astype(out_ref.dtype)


def _pick_block(n, target):
    """Largest divisor of n that is <= target and a multiple of 8 (or n itself)."""
    target = max(1, min(target, n))
    for b in range(target, 0, -1):
        if n % b == 0 and (b % 8 == 0 or b == n):
            return b
    return n


def lmsa_attention(x, w_qkv, scale, w_proj, b_proj, *, num_heads,
                   block_q=256, block_k=256, block_n=256):
    """x:(B,N,C), w_qkv:(C,3*in_dim), scale:(num_heads,), w_proj:(in_dim,in_dim),
    b_proj:(1,in_dim).  Weights are laid out (in, out)."""
    B, N, C = x.shape
    in_dim = w_proj.shape[0]
    H = num_heads
    assert in_dim % H == 0, "in_dim must be divisible by num_heads"
    d = in_dim // H
    assert N > 1, "LMSA diagonal mask needs N > 1"
    if H > 1:
        # PyTorch module adds the raw input as residual when num_heads > 1.
        assert C == in_dim, "residual `x + proj` requires C == in_dim when num_heads > 1"

    block_q = _pick_block(N, block_q)
    block_k = _pick_block(N, block_k)
    block_n = _pick_block(N, block_n)

    # Layout-only host-side reshapes of the (small) weights; done once.
    def split_heads(w):  # (C, in_dim) -> (H, C, d)
        return jnp.transpose(w.reshape(C, H, d), (1, 0, 2)).astype(jnp.bfloat16)

    wq = split_heads(w_qkv[:, 0 * in_dim:1 * in_dim])
    wk = split_heads(w_qkv[:, 1 * in_dim:2 * in_dim])
    wv = split_heads(w_qkv[:, 2 * in_dim:3 * in_dim])
    wp = w_proj.reshape(H, d, in_dim).astype(jnp.bfloat16)
    bp = jnp.reshape(b_proj, (1, in_dim)).astype(jnp.float32)
    scale_f32 = scale.astype(jnp.float32)

    # ---------------- kernel 1: QKV projection ----------------
    n_n = N // block_n
    q_arr, k_arr, v_arr = pl.pallas_call(
        qkv_proj_kernel,
        out_shape=(
            jax.ShapeDtypeStruct((B, H, N, d), jnp.bfloat16),   # q (scaled)
            jax.ShapeDtypeStruct((B, H, N, d), jnp.bfloat16),   # k
            jax.ShapeDtypeStruct((B, H, N, d), jnp.float32),    # v
        ),
        grid=(B, n_n, H),
        in_specs=[
            pl.BlockSpec((1, block_n, C), lambda b, i, h: (b, i, 0)),     # x tile
            pl.BlockSpec((1, C, d), lambda b, i, h: (h, 0, 0)),           # Wq head slice
            pl.BlockSpec((1, C, d), lambda b, i, h: (h, 0, 0)),           # Wk head slice
            pl.BlockSpec((1, C, d), lambda b, i, h: (h, 0, 0)),           # Wv head slice
            pl.BlockSpec(memory_space=pltpu.MemorySpace.SMEM),            # per-head scale
        ],
        out_specs=[
            pl.BlockSpec((1, 1, block_n, d), lambda b, i, h: (b, h, i, 0)),
            pl.BlockSpec((1, 1, block_n, d), lambda b, i, h: (b, h, i, 0)),
            pl.BlockSpec((1, 1, block_n, d), lambda b, i, h: (b, h, i, 0)),
        ],
        compiler_params=pltpu.CompilerParams(
            dimension_semantics=("parallel", "parallel", "arbitrary"),
            vmem_limit_bytes=48 * 1024 * 1024,
        ),
    )(x, wq, wk, wv, scale_f32)

    # Residual: v (per query row) for num_heads==1, the raw input otherwise.
    res = x if H > 1 else jnp.squeeze(v_arr, axis=1)

    # ---------------- kernel 2: flash LMSA + projection + residual ----------------
    n_q = N // block_q
    n_k = N // block_k
    out = pl.pallas_call(
        flash_lmsa_kernel,
        out_shape=jax.ShapeDtypeStruct((B, N, in_dim), x.dtype),
        grid=(B, n_q, H, n_k),
        in_specs=[
            pl.BlockSpec((1, 1, block_q, d), lambda b, qi, h, ki: (b, h, qi, 0)),  # q
            pl.BlockSpec((1, 1, block_k, d), lambda b, qi, h, ki: (b, h, ki, 0)),  # k
            pl.BlockSpec((1, 1, block_k, d), lambda b, qi, h, ki: (b, h, ki, 0)),  # v
            pl.BlockSpec((1, block_q, in_dim), lambda b, qi, h, ki: (b, qi, 0)),   # residual
            pl.BlockSpec(memory_space=pltpu.MemorySpace.VMEM),   # Wproj (H,d,in_dim), resident
            pl.BlockSpec(memory_space=pltpu.MemorySpace.VMEM),   # proj bias, resident
        ],
        out_specs=pl.BlockSpec((1, block_q, in_dim), lambda b, qi, h, ki: (b, qi, 0)),
        scratch_shapes=[
            pltpu.VMEM((block_q, 1), jnp.float32),        # m (running max)
            pltpu.VMEM((block_q, 1), jnp.float32),        # l (running denom)
            pltpu.VMEM((block_q, d), jnp.float32),        # per-head context accumulator
            pltpu.VMEM((block_q, in_dim), jnp.float32),   # projected output accumulator
        ],
        compiler_params=pltpu.CompilerParams(
            dimension_semantics=("parallel", "parallel", "arbitrary", "arbitrary"),
            vmem_limit_bytes=48 * 1024 * 1024,
        ),
    )(q_arr, k_arr, v_arr, res, wp, bp)
    return out


def reference(x, w_qkv, scale, w_proj, b_proj, num_heads):
    """Pure-JAX f32 mirror of the PyTorch Attention.forward for verification."""
    B, N, C = x.shape
    in_dim = w_proj.shape[0]
    d = in_dim // num_heads
    qkv = x @ w_qkv
    qkv = qkv.reshape(B, N, 3, num_heads, d).transpose(2, 0, 3, 1, 4)
    q, k, v = qkv[0], qkv[1], qkv[2]                       # (B, H, N, d)
    attn = jnp.einsum('bhid,bhjd->bhij', q, k) * scale[None, :, None, None]
    attn = jnp.where(jnp.eye(N, dtype=bool)[None, None], -jnp.inf, attn)
    attn = jax.nn.softmax(attn, axis=-1)
    out = jnp.einsum('bhij,bhjd->bhid', attn, v)
    out = out.transpose(0, 2, 1, 3).reshape(B, N, in_dim)
    out = out @ w_proj + b_proj[0]
    if num_heads == 1:
        return v[:, 0] + out
    return out + x


def _run_case(key, *, B, N, C, in_dim, num_heads, block):
    kx, kqkv, kproj, kb = jax.random.split(key, 4)
    x = jax.random.normal(kx, (B, N, C), dtype=jnp.float32)
    # nn.Linear(dim, 3*in_dim, bias=False): weight (3*in_dim, dim) -> pass transposed
    w_qkv = (jax.random.normal(kqkv, (3 * in_dim, C), dtype=jnp.float32) * 0.02).T
    head_dim = C // num_heads
    scale = jnp.full((num_heads,), head_dim ** (-0.5), dtype=jnp.float32)
    w_proj = (jax.random.normal(kproj, (in_dim, in_dim), dtype=jnp.float32) * 0.02).T
    b_proj = (jax.random.normal(kb, (in_dim,), dtype=jnp.float32) * 0.02).reshape(1, in_dim)

    out = lmsa_attention(x, w_qkv, scale, w_proj, b_proj, num_heads=num_heads,
                         block_q=block, block_k=block, block_n=block)
    out = jax.block_until_ready(out)

    ref = reference(x, w_qkv, scale, w_proj, b_proj, num_heads)
    assert out.shape == (B, N, in_dim)
    err = float(jnp.max(jnp.abs(out - ref)))
    assert jnp.allclose(out, ref, atol=2e-2, rtol=2e-2), \
        f"mismatch vs JAX reference (max abs err {err})"


if __name__ == "__main__":
    key = jax.random.PRNGKey(0)
    k1, k2 = jax.random.split(key)

    # Case 1: the configuration T2T_module actually uses (num_heads=1,
    # in_dim=token_dim), scaled down: multi-tile flash path (2x2 q/kv tiles).
    _run_case(k1, B=2, N=64, C=80, in_dim=64, num_heads=1, block=32)

    # Case 2: multi-head path (residual = x, requires C == in_dim).
    _run_case(k2, B=2, N=32, C=64, in_dim=64, num_heads=4, block=16)

    print("KERNEL_OK")
</pallas_src>

<mosaic_0001>
module attributes {stable_mosaic.version = 11 : i64} {
  func.func @qkv_proj_kernel(%arg0: i32, %arg1: i32, %arg2: i32, %arg3: memref<1x32x80xf32, #tpu.memory_space<vmem>>, %arg4: memref<1x80x64xbf16, #tpu.memory_space<vmem>>, %arg5: memref<1x80x64xbf16, #tpu.memory_space<vmem>>, %arg6: memref<1x80x64xbf16, #tpu.memory_space<vmem>>, %arg7: memref<1xf32, #tpu.memory_space<smem>>, %arg8: memref<1x1x32x64xbf16, #tpu.memory_space<vmem>>, %arg9: memref<1x1x32x64xbf16, #tpu.memory_space<vmem>>, %arg10: memref<1x1x32x64xf32, #tpu.memory_space<vmem>>) attributes {dimension_semantics = [#tpu.dimension_semantics<parallel>, #tpu.dimension_semantics<parallel>, #tpu.dimension_semantics<arbitrary>], iteration_bounds = array<i64: 2, 2, 1>, scalar_prefetch = 0 : i64, scratch_operands = 0 : i64, tpu.core_type = #tpu.core_type<tc>, window_params = [{transform_indices = @transform_0, window_bounds = array<i64: 1, 32, 80>}, {transform_indices = @transform_1, window_bounds = array<i64: 1, 80, 64>}, {transform_indices = @transform_2, window_bounds = array<i64: 1, 80, 64>}, {transform_indices = @transform_3, window_bounds = array<i64: 1, 80, 64>}, {transform_indices = @transform_4, window_bounds = array<i64: 1>}, {transform_indices = @transform_5, window_bounds = array<i64: 1, 1, 32, 64>}, {transform_indices = @transform_6, window_bounds = array<i64: 1, 1, 32, 64>}, {transform_indices = @transform_7, window_bounds = array<i64: 1, 1, 32, 64>}]} {
    %c0 = arith.constant 0 : index
    %c0_0 = arith.constant 0 : index
    %c0_1 = arith.constant 0 : index
    %0 = vector.load %arg3[%c0, %c0_0, %c0_1] : memref<1x32x80xf32, #tpu.memory_space<vmem>>, vector<1x32x80xf32>
    %1 = vector.shape_cast %0 : vector<1x32x80xf32> to vector<32x80xf32>
    %2 = arith.truncf %1 : vector<32x80xf32> to vector<32x80xbf16>
    %c0_2 = arith.constant 0 : index
    %c0_3 = arith.constant 0 : index
    %c0_4 = arith.constant 0 : index
    %3 = vector.load %arg4[%c0_2, %c0_3, %c0_4] : memref<1x80x64xbf16, #tpu.memory_space<vmem>>, vector<1x80x64xbf16>
    %4 = vector.shape_cast %3 : vector<1x80x64xbf16> to vector<80x64xbf16>
    %cst = arith.constant dense<0.000000e+00> : vector<32x64xf32>
    %5 = tpu.matmul %2, %4, %cst {dimension_numbers = #tpu.dot_dimension_numbers<[1], [0], [0], [1], [0, 0, 1, 1], [], []>} : vector<32x80xbf16>, vector<80x64xbf16>, vector<32x64xf32> -> vector<32x64xf32>
    %6 = arith.index_cast %arg2 : i32 to index
    %7 = memref.load %arg7[%6] : memref<1xf32, #tpu.memory_space<smem>>
    %8 = vector.broadcast %7 : f32 to vector<32x64xf32>
    %9 = arith.mulf %5, %8 : vector<32x64xf32>
    %c0_5 = arith.constant 0 : index
    %c0_6 = arith.constant 0 : index
    %c0_7 = arith.constant 0 : index
    %10 = vector.load %arg5[%c0_5, %c0_6, %c0_7] : memref<1x80x64xbf16, #tpu.memory_space<vmem>>, vector<1x80x64xbf16>
    %11 = vector.shape_cast %10 : vector<1x80x64xbf16> to vector<80x64xbf16>
    %cst_8 = arith.constant dense<0.000000e+00> : vector<32x64xf32>
    %12 = tpu.matmul %2, %11, %cst_8 {dimension_numbers = #tpu.dot_dimension_numbers<[1], [0], [0], [1], [0, 0, 1, 1], [], []>} : vector<32x80xbf16>, vector<80x64xbf16>, vector<32x64xf32> -> vector<32x64xf32>
    %c0_9 = arith.constant 0 : index
    %c0_10 = arith.constant 0 : index
    %c0_11 = arith.constant 0 : index
    %13 = vector.load %arg6[%c0_9, %c0_10, %c0_11] : memref<1x80x64xbf16, #tpu.memory_space<vmem>>, vector<1x80x64xbf16>
    %14 = vector.shape_cast %13 : vector<1x80x64xbf16> to vector<80x64xbf16>
    %cst_12 = arith.constant dense<0.000000e+00> : vector<32x64xf32>
    %15 = tpu.matmul %2, %14, %cst_12 {dimension_numbers = #tpu.dot_dimension_numbers<[1], [0], [0], [1], [0, 0, 1, 1], [], []>} : vector<32x80xbf16>, vector<80x64xbf16>, vector<32x64xf32> -> vector<32x64xf32>
    %16 = arith.truncf %9 : vector<32x64xf32> to vector<32x64xbf16>
    %c0_13 = arith.constant 0 : index
    %c0_14 = arith.constant 0 : index
    %c0_15 = arith.constant 0 : index
    %c0_16 = arith.constant 0 : index
    %17 = vector.load %arg8[%c0_13, %c0_14, %c0_15, %c0_16] : memref<1x1x32x64xbf16, #tpu.memory_space<vmem>>, vector<1x1x32x64xbf16>
    %18 = vector.shape_cast %17 : vector<1x1x32x64xbf16> to vector<32x64xbf16>
    %19 = vector.shape_cast %16 : vector<32x64xbf16> to vector<1x1x32x64xbf16>
    tpu.vector_store %arg8[%c0_13, %c0_14, %c0_15, %c0_16], %19 {strides = array<i32>} : memref<1x1x32x64xbf16, #tpu.memory_space<vmem>>, vector<1x1x32x64xbf16>,
    %20 = arith.truncf %12 : vector<32x64xf32> to vector<32x64xbf16>
    %c0_17 = arith.constant 0 : index
    %c0_18 = arith.constant 0 : index
    %c0_19 = arith.constant 0 : index
    %c0_20 = arith.constant 0 : index
    %21 = vector.load %arg9[%c0_17, %c0_18, %c0_19, %c0_20] : memref<1x1x32x64xbf16, #tpu.memory_space<vmem>>, vector<1x1x32x64xbf16>
    %22 = vector.shape_cast %21 : vector<1x1x32x64xbf16> to vector<32x64xbf16>
    %23 = vector.shape_cast %20 : vector<32x64xbf16> to vector<1x1x32x64xbf16>
    tpu.vector_store %arg9[%c0_17, %c0_18, %c0_19, %c0_20], %23 {strides = array<i32>} : memref<1x1x32x64xbf16, #tpu.memory_space<vmem>>, vector<1x1x32x64xbf16>,
    %c0_21 = arith.constant 0 : index
    %c0_22 = arith.constant 0 : index
    %c0_23 = arith.constant 0 : index
    %c0_24 = arith.constant 0 : index
    %24 = vector.load %arg10[%c0_21, %c0_22, %c0_23, %c0_24] : memref<1x1x32x64xf32, #tpu.memory_space<vmem>>, vector<1x1x32x64xf32>
    %25 = vector.shape_cast %24 : vector<1x1x32x64xf32> to vector<32x64xf32>
    %26 = vector.shape_cast %15 : vector<32x64xf32> to vector<1x1x32x64xf32>
    tpu.vector_store %arg10[%c0_21, %c0_22, %c0_23, %c0_24], %26 {strides = array<i32>} : memref<1x1x32x64xf32, #tpu.memory_space<vmem>>, vector<1x1x32x64xf32>,
    return
  }
  func.func @transform_0(%arg0: i32, %arg1: i32, %arg2: i32) -> (i32, i32, i32) {
    %c0_i32 = arith.constant 0 : i32
    %c0_i32_0 = arith.constant 0 : i32
    return %arg0, %arg1, %c0_i32 : i32, i32, i32
  }
  func.func @transform_1(%arg0: i32, %arg1: i32, %arg2: i32) -> (i32, i32, i32) {
    %c0_i32 = arith.constant 0 : i32
    %c0_i32_0 = arith.constant 0 : i32
    %c0_i32_1 = arith.constant 0 : i32
    return %arg2, %c0_i32, %c0_i32_0 : i32, i32, i32
  }
  func.func @transform_2(%arg0: i32, %arg1: i32, %arg2: i32) -> (i32, i32, i32) {
    %c0_i32 = arith.constant 0 : i32
    %c0_i32_0 = arith.constant 0 : i32
    %c0_i32_1 = arith.constant 0 : i32
    return %arg2, %c0_i32, %c0_i32_0 : i32, i32, i32
  }
  func.func @transform_3(%arg0: i32, %arg1: i32, %arg2: i32) -> (i32, i32, i32) {
    %c0_i32 = arith.constant 0 : i32
    %c0_i32_0 = arith.constant 0 : i32
    %c0_i32_1 = arith.constant 0 : i32
    return %arg2, %c0_i32, %c0_i32_0 : i32, i32, i32
  }
  func.func @transform_4(%arg0: i32, %arg1: i32, %arg2: i32) -> i32 {
    %c0_i32 = arith.constant 0 : i32
    %c0_i32_0 = arith.constant 0 : i32
    return %c0_i32 : i32
  }
  func.func @transform_5(%arg0: i32, %arg1: i32, %arg2: i32) -> (i32, i32, i32, i32) {
    %c0_i32 = arith.constant 0 : i32
    %c0_i32_0 = arith.constant 0 : i32
    return %arg0, %arg2, %arg1, %c0_i32 : i32, i32, i32, i32
  }
  func.func @transform_6(%arg0: i32, %arg1: i32, %arg2: i32) -> (i32, i32, i32, i32) {
    %c0_i32 = arith.constant 0 : i32
    %c0_i32_0 = arith.constant 0 : i32
    return %arg0, %arg2, %arg1, %c0_i32 : i32, i32, i32, i32
  }
  func.func @transform_7(%arg0: i32, %arg1: i32, %arg2: i32) -> (i32, i32, i32, i32) {
    %c0_i32 = arith.constant 0 : i32
    %c0_i32_0 = arith.constant 0 : i32
    return %arg0, %arg2, %arg1, %c0_i32 : i32, i32, i32, i32
  }
}

</mosaic_0001>

<llo_original>
// kernel: tpu_custom_call.1
$region0: #{tpu_custom_call.1}
  #allocation0 [shape = 'u32[]', space=smem, size = 0x4, offset = 0x4, fixed_abs, tag = 'smem constant byte address 0x4 - core index']
  #allocation1 [shape = 'u32[72,128]{1,0:T(1,128)}', space=vmem, size = 0x9000, scoped, tag = 'internal scratch']
  #allocation2 [shape = 'f32[1]{0:T(128)S(6)}', space=smem, size = 0x200, scoped, tag = 'scoped memory for tpu_custom_call.1']
  %s0 = inlined_call_operand.hbm [shape: f32[2,64,80], index: 0, kind: input, shape index: {}]
  %s1 = inlined_call_operand.vmem [shape: bf16[1,80,64], index: 1, kind: input, shape index: {}]
  %s2 = inlined_call_operand.vmem [shape: bf16[1,80,64], index: 2, kind: input, shape index: {}]
  %s3 = inlined_call_operand.vmem [shape: bf16[1,80,64], index: 3, kind: input, shape index: {}]
  %s4 = inlined_call_operand.<no memory space> [shape: f32[1], index: 4, kind: input, shape index: {}]
  %s5 = inlined_call_operand.hbm [shape: bf16[2,1,64,64], index: 5, kind: output, shape index: {0}]
  %s6 = inlined_call_operand.hbm [shape: bf16[2,1,64,64], index: 6, kind: output, shape index: {1}]
  %s7 = inlined_call_operand.hbm [shape: f32[2,1,64,64], index: 7, kind: output, shape index: {2}]
  %8 = xla_tuple %s5, %s6, %s7
  %s9 = sld [smem:[#allocation0]]
  $region73: #{tpu_custom_call.1} parent=0
    _
  %s11 = ssub.s32 1, %s9
  %s12 = scalar_select 0, %s11, %s9
  %13 = sst [smem:[#allocation2]] %s4
  $region1: #{tpu_custom_call.1} parent=0
    #allocation3 [shape = 'u8[32768]{0}', space=vmem, size = 0x8000, scoped, tag = 'input window, operand 0']
    #allocation4 [shape = 's32[2]{0}', space=sflag, size = 0x8, scoped, tag = 'scoped memory for tpu_custom_call.1']
    #allocation5 [shape = 's32[2]{0}', space=sflag, size = 0x8, scoped, tag = 'scoped memory for tpu_custom_call.1']
    #allocation6 [shape = 'u8[16384]{0}', space=vmem, size = 0x4000, scoped, tag = 'output window, operand 0']
    #allocation7 [shape = 'u8[16384]{0}', space=vmem, size = 0x4000, scoped, tag = 'output window, operand 1']
    #allocation8 [shape = 's32[2]{0}', space=sflag, size = 0x8, scoped, tag = 'scoped memory for tpu_custom_call.1']
    #allocation9 [shape = 'u8[32768]{0}', space=vmem, size = 0x8000, scoped, tag = 'output window, operand 2']
    %14 = vsyncpa [#allocation4], 0
    %s15 = scalar_lea.sflag [#allocation4], 1
    %16 = vsyncpa %s15, 0
    %17 = vsyncpa [#allocation5], 0
    %s18 = scalar_lea.sflag [#allocation5], 1
    %19 = vsyncpa %s18, 0
    %20 = vsyncpa [#allocation8], 0
    %s21 = scalar_lea.sflag [#allocation8], 1
    %22 = vsyncpa %s21, 0
    loop: start=0, step=1, limit=6
    $region2: #{tpu_custom_call.1} parent=1 // loop_pre_header
      _
    $region3: #{tpu_custom_call.1} parent=1 // loop_header
      %s24 = sphi 0, %s28
      %p25 = scmp.ge.s32.totalorder %s24, 6
      %s31 = sphi 0, %s50
      %s32 = sphi 0, %s46
      %s33 = sphi 0, %s42
      %s34 = sphi 0, %s31
      %s35 = sphi 0, %s32
      %s36 = sphi 0, %s33
      %s37 = sphi 0, %s34
      %s38 = sphi 0, %s35
      %s39 = sphi 0, %s36
      %s55 = sphi 0, %s57
      %s58 = sphi 0, %s55
      %s59 = sphi 0, %s58
      %s75 = sphi 0, %s59
      %s81 = sphi 0, %s83
      %s84 = sphi 0, %s81
      %s85 = sphi 0, %s84
      %s101 = sphi 0, %s85
      %s107 = sphi 0, %s109
      %s110 = sphi 0, %s107
      %s111 = sphi 0, %s110
      %s127 = sphi 0, %s111
      %s133 = sphi 0, %s135
      %s136 = sphi 0, %s133
      %s137 = sphi 0, %s136
      %s153 = sphi 0, %s137
      %s157 = sphi 0, %s157
      %s159 = sphi 0, %s157
      %s160 = sphi 0, %s159
      %s174 = sphi 0, %s160
      %s184 = sphi 0, %s186
      %s187 = sphi 0, %s184
      %s188 = sphi 0, %s187
      %s204 = sphi 0, %s188
      %s214 = sphi 0, %s216
      %s217 = sphi 0, %s214
      %s218 = sphi 0, %s217
      %s234 = sphi 0, %s218
      %s244 = sphi 0, %s246
      %s247 = sphi 0, %s244
      %s248 = sphi 0, %s247
      %s264 = sphi 0, %s248
    $region4: #{tpu_custom_call.1} parent=1 // loop_header_branch
      %27 = sbr.rel (%p25) target = $region8
    $region5: #{tpu_custom_call.1} parent=1 // loop_body
      %s29 = ssub.s32 %s24, 1
      %s30 = ssub.s32 %s24, 2
      %s40 = sadd.s32 1, %s33
      %p41 = scmp.ge.s32.totalorder %s40, 1
      %s42 = scalar_select %p41, 0, %s40
      %s43 = sadd.s32 1, %s32
      %s44 = scalar_select %p41, %s43, %s32
      %p45 = scmp.ge.s32.totalorder %s44, 2
      %s46 = scalar_select %p45, 0, %s44
      %s47 = sadd.s32 1, %s31
      %s48 = scalar_select %p45, %s47, %s31
      %p49 = scmp.ge.s32.totalorder %s48, 2
      %s50 = scalar_select %p49, 0, %s48
      %s51 = ssub.s32 %s31, %s50
      %s52 = ssub.s32 %s32, %s46
      %s53 = sor.u32 %s51, %s52
      %p54 = scmp.eq.s32.totalorder %s53, 0
      %s56 = sadd.s32 %s55, 1
      %s57 = scalar_select %p54, %s55, %s56
      %p60 = pneg %p54
      %p61 = scmp.eq.s32.totalorder %s24, 3
      %p62 = por %p60, %p61
      %p63 = scmp.ne.s32.totalorder %s55, %s58
      %p64 = scmp.eq.s32.totalorder %s24, 0
      %p65 = por %p63, %p64
      %p66 = scmp.ne.s32.totalorder %s55, %s58
      %p67 = scmp.eq.s32.totalorder %s29, 3
      %p68 = por %p66, %p67
      %p69 = scmp.ne.s32.totalorder %s58, %s59
      %p70 = scmp.eq.s32.totalorder %s29, 0
      %p71 = por %p69, %p70
      %p72 = scmp.ne.s32.totalorder %s58, %s59
      %p73 = scmp.eq.s32.totalorder %s30, 3
      %p74 = por %p72, %p73
      %p76 = scmp.ne.s32.totalorder %s59, %s75
      %p77 = scmp.eq.s32.totalorder %s30, 0
      %p78 = por %p76, %p77
      %s79 = ssub.s32 %s33, %s42
      %p80 = scmp.eq.s32.totalorder %s79, 0
      %s82 = sadd.s32 %s81, 1
      %s83 = scalar_select %p80, %s81, %s82
      %p86 = pneg %p80
      %p87 = scmp.eq.s32.totalorder %s24, 3
      %p88 = por %p86, %p87
      %p89 = scmp.ne.s32.totalorder %s81, %s84
      %p90 = scmp.eq.s32.totalorder %s24, 0
      %p91 = por %p89, %p90
      %p92 = scmp.ne.s32.totalorder %s81, %s84
      %p93 = scmp.eq.s32.totalorder %s29, 3
      %p94 = por %p92, %p93
      %p95 = scmp.ne.s32.totalorder %s84, %s85
      %p96 = scmp.eq.s32.totalorder %s29, 0
      %p97 = por %p95, %p96
      %p98 = scmp.ne.s32.totalorder %s84, %s85
      %p99 = scmp.eq.s32.totalorder %s30, 3
      %p100 = por %p98, %p99
      %p102 = scmp.ne.s32.totalorder %s85, %s101
      %p103 = scmp.eq.s32.totalorder %s30, 0
      %p104 = por %p102, %p103
      %s105 = ssub.s32 %s33, %s42
      %p106 = scmp.eq.s32.totalorder %s105, 0
      %s108 = sadd.s32 %s107, 1
      %s109 = scalar_select %p106, %s107, %s108
      %p112 = pneg %p106
      %p113 = scmp.eq.s32.totalorder %s24, 3
      %p114 = por %p112, %p113
      %p115 = scmp.ne.s32.totalorder %s107, %s110
      %p116 = scmp.eq.s32.totalorder %s24, 0
      %p117 = por %p115, %p116
      %p118 = scmp.ne.s32.totalorder %s107, %s110
      %p119 = scmp.eq.s32.totalorder %s29, 3
      %p120 = por %p118, %p119
      %p121 = scmp.ne.s32.totalorder %s110, %s111
      %p122 = scmp.eq.s32.totalorder %s29, 0
      %p123 = por %p121, %p122
      %p124 = scmp.ne.s32.totalorder %s110, %s111
      %p125 = scmp.eq.s32.totalorder %s30, 3
      %p126 = por %p124, %p125
      %p128 = scmp.ne.s32.totalorder %s111, %s127
      %p129 = scmp.eq.s32.totalorder %s30, 0
      %p130 = por %p128, %p129
      %s131 = ssub.s32 %s33, %s42
      %p132 = scmp.eq.s32.totalorder %s131, 0
      %s134 = sadd.s32 %s133, 1
      %s135 = scalar_select %p132, %s133, %s134
      %p138 = pneg %p132
      %p139 = scmp.eq.s32.totalorder %s24, 3
      %p140 = por %p138, %p139
      %p141 = scmp.ne.s32.totalorder %s133, %s136
      %p142 = scmp.eq.s32.totalorder %s24, 0
      %p143 = por %p141, %p142
      %p144 = scmp.ne.s32.totalorder %s133, %s136
      %p145 = scmp.eq.s32.totalorder %s29, 3
      %p146 = por %p144, %p145
      %p147 = scmp.ne.s32.totalorder %s136, %s137
      %p148 = scmp.eq.s32.totalorder %s29, 0
      %p149 = por %p147, %p148
      %p150 = scmp.ne.s32.totalorder %s136, %s137
      %p151 = scmp.eq.s32.totalorder %s30, 3
      %p152 = por %p150, %p151
      %p154 = scmp.ne.s32.totalorder %s137, %s153
      %p155 = scmp.eq.s32.totalorder %s30, 0
      %p156 = por %p154, %p155
      %s158 = sadd.s32 %s157, 1
      %p161 = scmp.eq.s32.totalorder %s24, 3
      %p162 = scmp.ne.s32.totalorder %s157, %s159
      %p163 = scmp.eq.s32.totalorder %s24, 0
      %p164 = por %p162, %p163
      %p165 = scmp.ne.s32.totalorder %s157, %s159
      %p166 = scmp.eq.s32.totalorder %s29, 3
      %p167 = por %p165, %p166
      %p168 = scmp.ne.s32.totalorder %s159, %s160
      %p169 = scmp.eq.s32.totalorder %s29, 0
      %p170 = por %p168, %p169
      %p171 = scmp.ne.s32.totalorder %s159, %s160
      %p172 = scmp.eq.s32.totalorder %s30, 3
      %p173 = por %p171, %p172
      %p175 = scmp.ne.s32.totalorder %s160, %s174
      %p176 = scmp.eq.s32.totalorder %s30, 0
      %p177 = por %p175, %p176
      %s178 = ssub.s32 %s31, %s50
      %s179 = ssub.s32 %s33, %s42
      %s180 = sor.u32 %s178, %s179
      %s181 = ssub.s32 %s32, %s46
      %s182 = sor.u32 %s180, %s181
      %p183 = scmp.eq.s32.totalorder %s182, 0
      %s185 = sadd.s32 %s184, 1
      %s186 = scalar_select %p183, %s184, %s185
      %p189 = pneg %p183
      %p190 = scmp.eq.s32.totalorder %s24, 3
      %p191 = por %p189, %p190
      %p192 = scmp.ne.s32.totalorder %s184, %s187
      %p193 = scmp.eq.s32.totalorder %s24, 0
      %p194 = por %p192, %p193
      %p195 = scmp.ne.s32.totalorder %s184, %s187
      %p196 = scmp.eq.s32.totalorder %s29, 3
      %p197 = por %p195, %p196
      %p198 = scmp.ne.s32.totalorder %s187, %s188
      %p199 = scmp.eq.s32.totalorder %s29, 0
      %p200 = por %p198, %p199
      %p201 = scmp.ne.s32.totalorder %s187, %s188
      %p202 = scmp.eq.s32.totalorder %s30, 3
      %p203 = por %p201, %p202
      %p205 = scmp.ne.s32.totalorder %s188, %s204
      %p206 = scmp.eq.s32.totalorder %s30, 0
      %p207 = por %p205, %p206
      %s208 = ssub.s32 %s31, %s50
      %s209 = ssub.s32 %s33, %s42
      %s210 = sor.u32 %s208, %s209
      %s211 = ssub.s32 %s32, %s46
      %s212 = sor.u32 %s210, %s211
      %p213 = scmp.eq.s32.totalorder %s212, 0
      %s215 = sadd.s32 %s214, 1
      %s216 = scalar_select %p213, %s214, %s215
      %p219 = pneg %p213
      %p220 = scmp.eq.s32.totalorder %s24, 3
      %p221 = por %p219, %p220
      %p222 = scmp.ne.s32.totalorder %s214, %s217
      %p223 = scmp.eq.s32.totalorder %s24, 0
      %p224 = por %p222, %p223
      %p225 = scmp.ne.s32.totalorder %s214, %s217
      %p226 = scmp.eq.s32.totalorder %s29, 3
      %p227 = por %p225, %p226
      %p228 = scmp.ne.s32.totalorder %s217, %s218
      %p229 = scmp.eq.s32.totalorder %s29, 0
      %p230 = por %p228, %p229
      %p231 = scmp.ne.s32.totalorder %s217, %s218
      %p232 = scmp.eq.s32.totalorder %s30, 3
      %p233 = por %p231, %p232
      %p235 = scmp.ne.s32.totalorder %s218, %s234
      %p236 = scmp.eq.s32.totalorder %s30, 0
      %p237 = por %p235, %p236
      %s238 = ssub.s32 %s31, %s50
      %s239 = ssub.s32 %s33, %s42
      %s240 = sor.u32 %s238, %s239
      %s241 = ssub.s32 %s32, %s46
      %s242 = sor.u32 %s240, %s241
      %p243 = scmp.eq.s32.totalorder %s242, 0
      %s245 = sadd.s32 %s244, 1
      %s246 = scalar_select %p243, %s244, %s245
      %p249 = pneg %p243
      %p250 = scmp.eq.s32.totalorder %s24, 3
      %p251 = por %p249, %p250
      %p252 = scmp.ne.s32.totalorder %s244, %s247
      %p253 = scmp.eq.s32.totalorder %s24, 0
      %p254 = por %p252, %p253
      %p255 = scmp.ne.s32.totalorder %s244, %s247
      %p256 = scmp.eq.s32.totalorder %s29, 3
      %p257 = por %p255, %p256
      %p258 = scmp.ne.s32.totalorder %s247, %s248
      %p259 = scmp.eq.s32.totalorder %s29, 0
      %p260 = por %p258, %p259
      %p261 = scmp.ne.s32.totalorder %s247, %s248
      %p262 = scmp.eq.s32.totalorder %s30, 3
      %p263 = por %p261, %p262
      %p265 = scmp.ne.s32.totalorder %s248, %s264
      %p266 = scmp.eq.s32.totalorder %s30, 0
      %p267 = por %p265, %p266
      %p268 = scmp.le.s32.totalorder 1, %s24
      %p269 = scmp.lt.s32.totalorder %s24, 5
      %p270 = pnand %p268, %p269
      %p271 = pneg %p270
      // Predicated region
      $region9: #{tpu_custom_call.1} parent=5 // pred_check
        _
      $region10: #{tpu_custom_call.1} parent=5 // pred_check_branch
        %273 = sbr.rel (%p270) target = $region12
      $region11: #{tpu_custom_call.1} parent=5 // pred_region
        %s274 = ssub.s32 %s24, 1
        // Predicated region
        $region13: #{tpu_custom_call.1} parent=11 // pred_check
          %p275 = pneg %p97
        $region14: #{tpu_custom_call.1} parent=11 // pred_check_branch
          %277 = sbr.rel (%p275) target = $region16
        $region15: #{tpu_custom_call.1} parent=11 // pred_region
          %p278 = scmp.lt.s32.totalorder %s36, 0
          %s279 = scalar_select %p278, %s36, 0
          %s280 = smul.addr %s279, 10
          %s281 = smul.addr %s280, 4
          %s282 = scalar_lea.vmem %s1, %s281
        $region16: #{tpu_custom_call.1} parent=11 // pred_fallthru
          _
        // Predicated region
        $region17: #{tpu_custom_call.1} parent=11 // pred_check
          %p283 = pneg %p123
        $region18: #{tpu_custom_call.1} parent=11 // pred_check_branch
          %285 = sbr.rel (%p283) target = $region20
        $region19: #{tpu_custom_call.1} parent=11 // pred_region
          %p286 = scmp.lt.s32.totalorder %s36, 0
          %s287 = scalar_select %p286, %s36, 0
          %s288 = smul.addr %s287, 10
          %s289 = smul.addr %s288, 4
          %s290 = scalar_lea.vmem %s2, %s289
        $region20: #{tpu_custom_call.1} parent=11 // pred_fallthru
          _
        // Predicated region
        $region21: #{tpu_custom_call.1} parent=11 // pred_check
          %p291 = pneg %p149
        $region22: #{tpu_custom_call.1} parent=11 // pred_check_branch
          %293 = sbr.rel (%p291) target = $region24
        $region23: #{tpu_custom_call.1} parent=11 // pred_region
          %p294 = scmp.lt.s32.totalorder %s36, 0
          %s295 = scalar_select %p294, %s36, 0
          %s296 = smul.addr %s295, 10
          %s297 = smul.addr %s296, 4
          %s298 = scalar_lea.vmem %s3, %s297
        $region24: #{tpu_custom_call.1} parent=11 // pred_fallthru
          _
        // Predicated region
        $region25: #{tpu_custom_call.1} parent=11 // pred_check
          %p299 = pneg %p170
        $region26: #{tpu_custom_call.1} parent=11 // pred_check_branch
          %301 = sbr.rel (%p299) target = $region28
        $region27: #{tpu_custom_call.1} parent=11 // pred_region
          _
        $region28: #{tpu_custom_call.1} parent=11 // pred_fallthru
          _
      $region12: #{tpu_custom_call.1} parent=5 // pred_fallthru
        _
      %p302 = scmp.lt.s32.totalorder %s24, 4
      // Predicated region
      $region29: #{tpu_custom_call.1} parent=5 // pred_check
        %p303 = pneg %p302
      $region30: #{tpu_custom_call.1} parent=5 // pred_check_branch
        %305 = sbr.rel (%p303) target = $region32
      $region31: #{tpu_custom_call.1} parent=5 // pred_region
        // Predicated region
        $region33: #{tpu_custom_call.1} parent=31 // pred_check
          %p306 = pneg %p65
        $region34: #{tpu_custom_call.1} parent=31 // pred_check_branch
          %308 = sbr.rel (%p306) target = $region36
        $region35: #{tpu_custom_call.1} parent=31 // pred_region
          %s309 = sand.u32 %s55, 1
          %s310 = scalar_lea.sflag [#allocation4], %s309
          %s311 = sand.u32 %s55, 1
          %s312 = smul.addr %s311, 32
          %s313 = scalar_lea.vmem [#allocation3], %s312
          %s314 = smul.u32 4, %s32
          %316 = vsyncadd %s310, 0
          %s317 = smul.addr %s31, 8
          %s318 = sadd.s32 %s314, %s317
          %s319 = smul.addr %s318, 8
          %s320 = scalar_lea.hbm %s0, %s319
          %s321 = sshll.u32 %s320, 4
          %s322 = int_to_ptr.hbm [resolvable:$true] %s321
          %s323 = sshll.u32 %s313, 4
          %s324 = int_to_ptr.vmem [resolvable:$true] %s323
          %329 = dma.hbm_to_vmem [thread:$0]  %s322, 512, %s324, %s310, 128, 128, 8
        $region36: #{tpu_custom_call.1} parent=31 // pred_fallthru
          _
      $region32: #{tpu_custom_call.1} parent=5 // pred_fallthru
        _
      %p330 = scmp.le.s32.totalorder 1, %s24
      %p331 = scmp.lt.s32.totalorder %s24, 5
      %p332 = pnand %p330, %p331
      %p333 = pneg %p332
      // Predicated region
      $region37: #{tpu_custom_call.1} parent=5 // pred_check
        _
      $region38: #{tpu_custom_call.1} parent=5 // pred_check_branch
        %335 = sbr.rel (%p332) target = $region40
      $region39: #{tpu_custom_call.1} parent=5 // pred_region
        %s336 = ssub.s32 %s24, 1
        %s337 = sand.u32 %s58, 1
        %s338 = scalar_lea.sflag [#allocation4], %s337
        %s339 = sand.u32 %s58, 1
        %s340 = smul.addr %s339, 32
        %s341 = scalar_lea.vmem [#allocation3], %s340
        // Predicated region
        $region41: #{tpu_custom_call.1} parent=39 // pred_check
          %p342 = pneg %p71
        $region42: #{tpu_custom_call.1} parent=39 // pred_check_branch
          %344 = sbr.rel (%p342) target = $region44
        $region43: #{tpu_custom_call.1} parent=39 // pred_region
          %346 = dma.done %s338, 512
        $region44: #{tpu_custom_call.1} parent=39 // pred_fallthru
          _
        %s347 = sand.u32 %s58, 1
        %s348 = scalar_lea.sflag [#allocation4], %s347
        %s349 = sand.u32 %s58, 1
        %s350 = smul.addr %s349, 32
        %s351 = scalar_lea.vmem [#allocation3], %s350
        %p352 = pneg %p71
        %p353 = pneg %p68
        %p354 = scmp.lt.s32.totalorder %s36, 0
        %s355 = scalar_select %p354, %s36, 0
        %s356 = smul.addr %s355, 10
        %s357 = smul.addr %s356, 4
        %s358 = scalar_lea.vmem %s1, %s357
        %p359 = pneg %p97
        %p360 = pneg %p94
        %p361 = scmp.lt.s32.totalorder %s36, 0
        %s362 = scalar_select %p361, %s36, 0
        %s363 = smul.addr %s362, 10
        %s364 = smul.addr %s363, 4
        %s365 = scalar_lea.vmem %s2, %s364
        %p366 = pneg %p123
        %p367 = pneg %p120
        %p368 = scmp.lt.s32.totalorder %s36, 0
        %s369 = scalar_select %p368, %s36, 0
        %s370 = smul.addr %s369, 10
        %s371 = smul.addr %s370, 4
        %s372 = scalar_lea.vmem %s3, %s371
        %p373 = pneg %p149
        %p374 = pneg %p146
        %p375 = pneg %p170
        %p376 = pneg %p167
        %p377 = pneg %p200
        %p378 = pneg %p197
        %s379 = sand.u32 %s187, 1
        %s380 = scalar_lea.sflag [#allocation5], %s379
        %s381 = sand.u32 %s187, 1
        %s382 = smul.addr %s381, 16
        %s383 = scalar_lea.vmem [#allocation6], %s382
        %p384 = pneg %p230
        %p385 = pneg %p227
        %s386 = sand.u32 %s29, 1
        %s387 = scalar_lea.sflag [#allocation8], %s386
        %s388 = sand.u32 %s217, 1
        %s389 = smul.addr %s388, 16
        %s390 = scalar_lea.vmem [#allocation7], %s389
        %p391 = pneg %p260
        %p392 = pneg %p257
        %s393 = sand.u32 %s29, 1
        %s394 = scalar_lea.sflag [#allocation8], %s393
        %s395 = sand.u32 %s247, 1
        %s396 = smul.addr %s395, 32
        %s397 = scalar_lea.vmem [#allocation9], %s396
        %s398 = smul.u32 4, %s35
        %p399 = scmp.lt.s32.totalorder %s36, 0
        %s400 = scalar_select %p399, %s36, 0
        %s401 = smul.addr %s400, 10
        %s402 = smul.addr %s401, 4
        %s403 = scalar_lea.vmem %s1, %s402
        %p404 = scmp.lt.s32.totalorder %s36, 0
        %s405 = scalar_select %p404, %s36, 0
        %s406 = smul.addr %s405, 10
        %s407 = smul.addr %s406, 4
        %s408 = scalar_lea.vmem %s2, %s407
        %p409 = scmp.lt.s32.totalorder %s36, 0
        %s410 = scalar_select %p409, %s36, 0
        %s411 = smul.addr %s410, 10
        %s412 = smul.addr %s411, 4
        %s413 = scalar_lea.vmem %s3, %s412
        %s414 = smul.u32 4, %s35
        %s415 = smul.u32 4, %s35
        %s416 = smul.u32 4, %s35
        %v418 = vld [vmem:[%s341] sm:$0xff]
        %v419 = vld [vmem:[%s341 + $0x8] sm:$0xff]
        %v420 = vld [vmem:[%s341 + $0x10] sm:$0xff]
        %v421 = vld [vmem:[%s341 + $0x18] sm:$0xff]
        %v422 = vpack.c.bf16 %v419, %v418
        %v423 = vpack.c.bf16 %v421, %v420
        %v424 = vld [vmem:[%s403] sm:$0xf]
        %v425 = vld [vmem:[%s403 + $0x4] sm:$0xf]
        %v426 = vld [vmem:[%s403 + $0x8] sm:$0xf]
        %v427 = vld [vmem:[%s403 + $0xc] sm:$0xf]
        %v428 = vld [vmem:[%s403 + $0x10] sm:$0xf]
        %v429 = vld [vmem:[%s403 + $0x14] sm:$0xf]
        %v430 = vld [vmem:[%s403 + $0x18] sm:$0xf]
        %v431 = vld [vmem:[%s403 + $0x1c] sm:$0xf]
        %v432 = vld [vmem:[%s403 + $0x20] sm:$0xf]
        %v433 = vld [vmem:[%s403 + $0x24] sm:$0xf]
        %v444 = vunpack.c.l.b16 %v424
        %v445 = vunpack.c.l.b16 %v425
        %v446 = vunpack.c.l.b16 %v426
        %v447 = vunpack.c.l.b16 %v427
        %v448 = vunpack.c.l.b16 %v428
        %v449 = vunpack.c.l.b16 %v429
        %v450 = vunpack.c.l.b16 %v430
        %v451 = vunpack.c.l.b16 %v431
        %v452 = vunpack.c.l.b16 %v432
        %v453 = vunpack.c.l.b16 %v433
        %v454 = vpack.c.b16 %v445, %v444
        %v455 = vpack.c.b16 %v447, %v446
        %v456 = vpack.c.b16 %v449, %v448
        %v457 = vpack.c.b16 %v451, %v450
        %v458 = vpack.c.b16 %v453, %v452
        %vm464 = vcmask 654336
        %v466 = vsel %vm464, %v422, 0
        %v469 = vsel %vm464, %v423, 0
        %471 = vmatpush.bf16.msra.mxu0 0
        %472 = vmatpush.bf16.msra.mxu0 0
        %473 = vmatpush.bf16.msra.mxu0 0
        %474 = vmatpush.bf16.msra.mxu0 %v458
        %475 = vmatpush.bf16.msra.mxu0 %v457
        %476 = vmatpush.bf16.msra.mxu0 %v456
        %477 = vmatpush.bf16.msra.mxu0 %v455
        %478 = vmatpush.bf16.msra.mxu0 %v454
        %479 = vmatmul.bf16.gmra.mxu0 %v466
        %v480 = vpop.f32.mrf.mxu0
        %v481 = vadd.f32 0.0, %v480
        %v482 = vpop.f32.mrf.mxu0
        %v483 = vadd.f32 0.0, %v482
        %484 = vmatmul.bf16.gmra.mxu0 %v469
        %v485 = vpop.f32.mrf.mxu0
        %v486 = vadd.f32 0.0, %v485
        %v487 = vpop.f32.mrf.mxu0
        %v488 = vadd.f32 0.0, %v487
        %489 = vdwg.mxu0
        %s490 = sld [smem:[#allocation2 + %s36]]
        %v491 = vstv %s490
        %v492 = vmul.f32 %v481, %v491
        %v493 = vmul.f32 %v483, %v491
        %v494 = vmul.f32 %v486, %v491
        %v495 = vmul.f32 %v488, %v491
        %v496 = vld [vmem:[%s408] sm:$0xf]
        %v497 = vld [vmem:[%s408 + $0x4] sm:$0xf]
        %v498 = vld [vmem:[%s408 + $0x8] sm:$0xf]
        %v499 = vld [vmem:[%s408 + $0xc] sm:$0xf]
        %v500 = vld [vmem:[%s408 + $0x10] sm:$0xf]
        %v501 = vld [vmem:[%s408 + $0x14] sm:$0xf]
        %v502 = vld [vmem:[%s408 + $0x18] sm:$0xf]
        %v503 = vld [vmem:[%s408 + $0x1c] sm:$0xf]
        %v504 = vld [vmem:[%s408 + $0x20] sm:$0xf]
        %v505 = vld [vmem:[%s408 + $0x24] sm:$0xf]
        %v516 = vunpack.c.l.b16 %v496
        %v517 = vunpack.c.l.b16 %v497
        %v518 = vunpack.c.l.b16 %v498
        %v519 = vunpack.c.l.b16 %v499
        %v520 = vunpack.c.l.b16 %v500
        %v521 = vunpack.c.l.b16 %v501
        %v522 = vunpack.c.l.b16 %v502
        %v523 = vunpack.c.l.b16 %v503
        %v524 = vunpack.c.l.b16 %v504
        %v525 = vunpack.c.l.b16 %v505
        %v526 = vpack.c.b16 %v517, %v516
        %v527 = vpack.c.b16 %v519, %v518
        %v528 = vpack.c.b16 %v521, %v520
        %v529 = vpack.c.b16 %v523, %v522
        %v530 = vpack.c.b16 %v525, %v524
        %536 = vmatpush.bf16.msra.mxu0 0
        %537 = vmatpush.bf16.msra.mxu0 0
        %538 = vmatpush.bf16.msra.mxu0 0
        %539 = vmatpush.bf16.msra.mxu0 %v530
        %540 = vmatpush.bf16.msra.mxu0 %v529
        %541 = vmatpush.bf16.msra.mxu0 %v528
        %542 = vmatpush.bf16.msra.mxu0 %v527
        %543 = vmatpush.bf16.msra.mxu0 %v526
        %544 = vmatmul.bf16.gmra.mxu0 %v466
        %v545 = vpop.f32.mrf.mxu0
        %v546 = vadd.f32 0.0, %v545
        %v547 = vpop.f32.mrf.mxu0
        %v548 = vadd.f32 0.0, %v547
        %549 = vmatmul.bf16.gmra.mxu0 %v469
        %v550 = vpop.f32.mrf.mxu0
        %v551 = vadd.f32 0.0, %v550
        %v552 = vpop.f32.mrf.mxu0
        %v553 = vadd.f32 0.0, %v552
        %554 = vdwg.mxu0
        %v555 = vld [vmem:[%s413] sm:$0xf]
        %v556 = vld [vmem:[%s413 + $0x4] sm:$0xf]
        %v557 = vld [vmem:[%s413 + $0x8] sm:$0xf]
        %v558 = vld [vmem:[%s413 + $0xc] sm:$0xf]
        %v559 = vld [vmem:[%s413 + $0x10] sm:$0xf]
        %v560 = vld [vmem:[%s413 + $0x14] sm:$0xf]
        %v561 = vld [vmem:[%s413 + $0x18] sm:$0xf]
        %v562 = vld [vmem:[%s413 + $0x1c] sm:$0xf]
        %v563 = vld [vmem:[%s413 + $0x20] sm:$0xf]
        %v564 = vld [vmem:[%s413 + $0x24] sm:$0xf]
        %v575 = vunpack.c.l.b16 %v555
        %v576 = vunpack.c.l.b16 %v556
        %v577 = vunpack.c.l.b16 %v557
        %v578 = vunpack.c.l.b16 %v558
        %v579 = vunpack.c.l.b16 %v559
        %v580 = vunpack.c.l.b16 %v560
        %v581 = vunpack.c.l.b16 %v561
        %v582 = vunpack.c.l.b16 %v562
        %v583 = vunpack.c.l.b16 %v563
        %v584 = vunpack.c.l.b16 %v564
        %v585 = vpack.c.b16 %v576, %v575
        %v586 = vpack.c.b16 %v578, %v577
        %v587 = vpack.c.b16 %v580, %v579
        %v588 = vpack.c.b16 %v582, %v581
        %v589 = vpack.c.b16 %v584, %v583
        %595 = vmatpush.bf16.msra.mxu0 0
        %596 = vmatpush.bf16.msra.mxu0 0
        %597 = vmatpush.bf16.msra.mxu0 0
        %598 = vmatpush.bf16.msra.mxu0 %v589
        %599 = vmatpush.bf16.msra.mxu0 %v588
        %600 = vmatpush.bf16.msra.mxu0 %v587
        %601 = vmatpush.bf16.msra.mxu0 %v586
        %602 = vmatpush.bf16.msra.mxu0 %v585
        %603 = vmatmul.bf16.gmra.mxu0 %v466
        %v604 = vpop.f32.mrf.mxu0
        %v605 = vadd.f32 0.0, %v604
        %v606 = vpop.f32.mrf.mxu0
        %v607 = vadd.f32 0.0, %v606
        %608 = vmatmul.bf16.gmra.mxu0 %v469
        %v609 = vpop.f32.mrf.mxu0
        %v610 = vadd.f32 0.0, %v609
        %v611 = vpop.f32.mrf.mxu0
        %v612 = vadd.f32 0.0, %v611
        %613 = vdwg.mxu0
        %v614 = vpack.c.bf16 %v492, %v492
        %v615 = vpack.c.bf16 %v493, %v493
        %v616 = vpack.c.bf16 %v494, %v494
        %v617 = vpack.c.bf16 %v495, %v495
        %vm618 = vcmask 519168
        %619 = vst.msk [vmem:[%s383] sm:$0xf] %vm618, %v614
        %620 = vst.msk [vmem:[%s383 + $0x4] sm:$0xf] %vm618, %v615
        %621 = vst.msk [vmem:[%s383 + $0x8] sm:$0xf] %vm618, %v616
        %622 = vst.msk [vmem:[%s383 + $0xc] sm:$0xf] %vm618, %v617
        %v623 = vpack.c.bf16 %v546, %v546
        %v624 = vpack.c.bf16 %v548, %v548
        %v625 = vpack.c.bf16 %v551, %v551
        %v626 = vpack.c.bf16 %v553, %v553
        %627 = vst.msk [vmem:[%s390] sm:$0xf] %vm618, %v623
        %628 = vst.msk [vmem:[%s390 + $0x4] sm:$0xf] %vm618, %v624
        %629 = vst.msk [vmem:[%s390 + $0x8] sm:$0xf] %vm618, %v625
        %630 = vst.msk [vmem:[%s390 + $0xc] sm:$0xf] %vm618, %v626
        %vm631 = vcmask 523264
        %632 = vst.msk [vmem:[%s397] sm:$0xff] %vm631, %v605
        %633 = vst.msk [vmem:[%s397 + $0x8] sm:$0xff] %vm631, %v607
        %634 = vst.msk [vmem:[%s397 + $0x10] sm:$0xff] %vm631, %v610
        %635 = vst.msk [vmem:[%s397 + $0x18] sm:$0xff] %vm631, %v612
        %s636 = sand.u32 %s187, 1
        %s637 = scalar_lea.sflag [#allocation5], %s636
        %s638 = sand.u32 %s187, 1
        %s639 = smul.addr %s638, 16
        %s640 = scalar_lea.vmem [#allocation6], %s639
        %s641 = sand.u32 %s29, 1
        %s642 = scalar_lea.sflag [#allocation8], %s641
        %s643 = sand.u32 %s217, 1
        %s644 = smul.addr %s643, 16
        %s645 = scalar_lea.vmem [#allocation7], %s644
        %s646 = sand.u32 %s29, 1
        %s647 = scalar_lea.sflag [#allocation8], %s646
        %s648 = sand.u32 %s247, 1
        %s649 = smul.addr %s648, 32
        %s650 = scalar_lea.vmem [#allocation9], %s649
        // Predicated region
        $region45: #{tpu_custom_call.1} parent=39 // pred_check
          %p651 = pneg %p197
        $region46: #{tpu_custom_call.1} parent=39 // pred_check_branch
          %653 = sbr.rel (%p651) target = $region48
        $region47: #{tpu_custom_call.1} parent=39 // pred_region
          %s654 = smul.u32 4, %s35
          %656 = vsyncadd %s637, 0
          %s657 = smul.addr %s36, 8
          %s658 = sadd.s32 %s654, %s657
          %s659 = smul.addr %s34, 8
          %s660 = sadd.s32 %s658, %s659
          %s661 = smul.addr %s660, 4
          %s662 = scalar_lea.hbm %s5, %s661
          %s663 = sshll.u32 %s640, 4
          %s664 = int_to_ptr.vmem [resolvable:$true] %s663
          %s665 = sshll.u32 %s662, 4
          %s666 = int_to_ptr.hbm [resolvable:$true] %s665
          %671 = dma.vmem_to_hbm [thread:$0]  %s664, 256, %s666, %s637, 64, 64, 4
        $region48: #{tpu_custom_call.1} parent=39 // pred_fallthru
          _
        // Predicated region
        $region49: #{tpu_custom_call.1} parent=39 // pred_check
          %p672 = pneg %p227
        $region50: #{tpu_custom_call.1} parent=39 // pred_check_branch
          %674 = sbr.rel (%p672) target = $region52
        $region51: #{tpu_custom_call.1} parent=39 // pred_region
          %s675 = smul.u32 4, %s35
          %677 = vsyncadd %s642, 0
          %s678 = smul.addr %s36, 8
          %s679 = sadd.s32 %s675, %s678
          %s680 = smul.addr %s34, 8
          %s681 = sadd.s32 %s679, %s680
          %s682 = smul.addr %s681, 4
          %s683 = scalar_lea.hbm %s6, %s682
          %s684 = sshll.u32 %s645, 4
          %s685 = int_to_ptr.vmem [resolvable:$true] %s684
          %s686 = sshll.u32 %s683, 4
          %s687 = int_to_ptr.hbm [resolvable:$true] %s686
          %692 = dma.vmem_to_hbm [thread:$0]  %s685, 256, %s687, %s642, 64, 64, 4
        $region52: #{tpu_custom_call.1} parent=39 // pred_fallthru
          _
        // Predicated region
        $region53: #{tpu_custom_call.1} parent=39 // pred_check
          %p693 = pneg %p257
        $region54: #{tpu_custom_call.1} parent=39 // pred_check_branch
          %695 = sbr.rel (%p693) target = $region56
        $region55: #{tpu_custom_call.1} parent=39 // pred_region
          %s696 = smul.u32 4, %s35
          %698 = vsyncadd %s647, 0
          %s699 = smul.addr %s36, 8
          %s700 = sadd.s32 %s696, %s699
          %s701 = smul.addr %s34, 8
          %s702 = sadd.s32 %s700, %s701
          %s703 = smul.addr %s702, 8
          %s704 = scalar_lea.hbm %s7, %s703
          %s705 = sshll.u32 %s650, 4
          %s706 = int_to_ptr.vmem [resolvable:$true] %s705
          %s707 = sshll.u32 %s704, 4
          %s708 = int_to_ptr.hbm [resolvable:$true] %s707
          %713 = dma.vmem_to_hbm [thread:$0]  %s706, 512, %s708, %s647, 128, 128, 8
        $region56: #{tpu_custom_call.1} parent=39 // pred_fallthru
          _
      $region40: #{tpu_custom_call.1} parent=5 // pred_fallthru
        _
      %p714 = scmp.le.s32.totalorder 2, %s24
      // Predicated region
      $region57: #{tpu_custom_call.1} parent=5 // pred_check
        %p715 = pneg %p714
      $region58: #{tpu_custom_call.1} parent=5 // pred_check_branch
        %717 = sbr.rel (%p715) target = $region60
      $region59: #{tpu_custom_call.1} parent=5 // pred_region
        %s718 = ssub.s32 %s24, 2
        // Predicated region
        $region61: #{tpu_custom_call.1} parent=59 // pred_check
          %p719 = pneg %p203
        $region62: #{tpu_custom_call.1} parent=59 // pred_check_branch
          %721 = sbr.rel (%p719) target = $region64
        $region63: #{tpu_custom_call.1} parent=59 // pred_region
          %s722 = sand.u32 %s188, 1
          %s723 = scalar_lea.sflag [#allocation5], %s722
          %s724 = sand.u32 %s188, 1
          %s725 = smul.addr %s724, 16
          %s726 = scalar_lea.vmem [#allocation6], %s725
          %728 = dma.done %s723, 256
        $region64: #{tpu_custom_call.1} parent=59 // pred_fallthru
          _
        // Predicated region
        $region65: #{tpu_custom_call.1} parent=59 // pred_check
          %p729 = pneg %p233
        $region66: #{tpu_custom_call.1} parent=59 // pred_check_branch
          %731 = sbr.rel (%p729) target = $region68
        $region67: #{tpu_custom_call.1} parent=59 // pred_region
          %s732 = sand.u32 %s30, 1
          %s733 = scalar_lea.sflag [#allocation8], %s732
          %s734 = sand.u32 %s218, 1
          %s735 = smul.addr %s734, 16
          %s736 = scalar_lea.vmem [#allocation7], %s735
          %738 = dma.done %s733, 256
        $region68: #{tpu_custom_call.1} parent=59 // pred_fallthru
          _
        // Predicated region
        $region69: #{tpu_custom_call.1} parent=59 // pred_check
          %p739 = pneg %p263
        $region70: #{tpu_custom_call.1} parent=59 // pred_check_branch
          %741 = sbr.rel (%p739) target = $region72
        $region71: #{tpu_custom_call.1} parent=59 // pred_region
          %s742 = sand.u32 %s30, 1
          %s743 = scalar_lea.sflag [#allocation8], %s742
          %s744 = sand.u32 %s248, 1
          %s745 = smul.addr %s744, 32
          %s746 = scalar_lea.vmem [#allocation9], %s745
          %748 = dma.done %s743, 512
        $region72: #{tpu_custom_call.1} parent=59 // pred_fallthru
          _
      $region60: #{tpu_custom_call.1} parent=5 // pred_fallthru
        _
    $region6: #{tpu_custom_call.1} parent=1 // loop_footer
      %s28 = sadd.s32 1, %s24
    $region7: #{tpu_custom_call.1} parent=1 // loop_footer_branch
      %23 = sbr.rel target = $region3
    $region8: #{tpu_custom_call.1} parent=1 // loop_exit
      _
    %749 = vsyncpa [#allocation4], 1
    %s750 = scalar_lea.sflag [#allocation4], 1
    %751 = vsyncpa %s750, 1
    %752 = vsyncpa [#allocation5], 1
    %s753 = scalar_lea.sflag [#allocation5], 1
    %754 = vsyncpa %s753, 1
    %755 = vsyncpa [#allocation8], 1
    %s756 = scalar_lea.sflag [#allocation8], 1
    %757 = vsyncpa %s756, 1

</llo_original>
